<compile_context>
chip_gen: v7x
topology: tpu7x:2x2x1
jax: 0.10.0
libtpu: 0.0.40
codegen_flags: <defaults>
</compile_context>

<pallas_src>
import functools
import math

import jax
import jax.numpy as jnp
from jax.experimental import pallas as pl
from jax.experimental.pallas import tpu as pltpu

_EPS = 1e-6


# ----------------------------- sizing helpers ------------------------------

def _sublane_pack(itemsize: int) -> int:
    # rows per packed sublane group: 8 for 32-bit, 16 for bf16, 32 for 8-bit.
    return max(8, 32 // itemsize)


def _vmem_capacity_bytes() -> int:
    try:
        return int(pltpu.get_tpu_info().vmem_capacity_bytes)
    except Exception:
        return 64 << 20  # conservative fallback (v7x per-core VMEM)


def _vmem_need(block_bytes: int, itemsize: int) -> int:
    # double-buffered in + out blocks, ~3 f32-sized temporaries, small slack.
    blk_f32 = (block_bytes * 4) // itemsize
    return 4 * block_bytes + 3 * blk_f32 + (2 << 20)


def _vmem_limit(block_bytes: int, itemsize: int, vmem_cap: int) -> int:
    cap = (vmem_cap * 7) // 8  # leave headroom below physical VMEM
    return int(min(max(_vmem_need(block_bytes, itemsize), 16 << 20), cap))


def _default_block_bytes(itemsize: int, vmem_cap: int) -> int:
    # Generation-aware block budget: largest block whose pipeline working set
    # stays under ~70% of VMEM.  ~12.5 MiB (f32) / ~8.7 MiB (bf16) on 128 MiB
    # v5e/v6e; ~6 MiB / ~4 MiB on 64 MiB v7x.
    factor = 4 + 3 * max(1, 4 // itemsize)
    blk = (int(0.70 * vmem_cap) - (2 << 20)) // factor
    blk = max(1 << 20, min(blk, 16 << 20))
    return (blk // (256 << 10)) * (256 << 10)


def _choose_fold(S: int, C: int, itemsize: int, budget: int) -> int:
    """How many spatial positions to pack into the lane axis (lane-dense)."""
    lane = 128
    base = lane // math.gcd(C, lane)  # smallest fold making L a 128-multiple
    pack = _sublane_pack(itemsize)

    def fits(f):
        return pack * f * C * itemsize <= budget

    if base == 1:
        return 1
    if S % base == 0 and fits(base):
        return base
    # Fallback: C is not a 128-multiple and `base` does not divide S.  Pick
    # the largest divisor of S that keeps rows wide (mostly unmasked stores)
    # within the tile budget.
    best = 1
    f = 2
    while f * f <= S:
        if S % f == 0:
            for d in (f, S // f):
                if d > best and d * C <= 4096 and fits(d):
                    best = d
        f += 1
    if S * C <= 4096 and fits(S):
        best = max(best, S)
    return best


def _choose_row_tile(R: int, L: int, itemsize: int, budget: int) -> int:
    """Rows per tile: multiple of the sublane pack; prefer large exact
    divisors, otherwise take the biggest tile and mask the ragged last one."""
    pack = _sublane_pack(itemsize)
    max_rows = max(pack, budget // (L * itemsize))
    if max_rows >= R:
        return R
    t_full = max(pack, (max_rows // pack) * pack)
    # Only accept an exact divisor if it is >= max(t_full/2-ish, ~1 MiB tile).
    floor_rows = ((1 << 20) // (L * itemsize) // pack) * pack
    thresh = max(pack, min(t_full // 2, floor_rows))
    t = t_full
    while t >= thresh:
        if R % t == 0:
            return t
        t -= pack
    return t_full  # ragged last tile handled with a masked accumulate


# -------------------------------- kernels ----------------------------------

def _fold_reduce_lanes(sq, fold, C):
    """(1, fold*C) per-lane sums -> (1, C) per-channel sums."""
    if fold == 1:
        return sq
    out = sq[:, 0:C]
    for g in range(1, fold):
        out = out + sq[:, g * C:(g + 1) * C]
    return out


def _lane_scale(sq, gamma_f32, fold, C):
    """Fused per-lane scale a = gamma * Nx + 1 from per-lane sum of squares."""
    sq_c = _fold_reduce_lanes(sq, fold, C)                    # (1, C)
    gx = jnp.sqrt(sq_c)                                       # (1, C)
    nx = gx / (jnp.mean(gx, axis=-1, keepdims=True) + _EPS)   # (1, C)
    if fold > 1:
        nx = jnp.concatenate([nx] * fold, axis=-1)            # (1, fold*C)
    return gamma_f32 * nx + 1.0


def _grn_fast_kernel(x_ref, gamma_ref, beta_ref, o_ref, *, fold, C):
    # x_ref/o_ref: (R, L); gamma_ref/beta_ref: (1, L).  Single pass per sample.
    xf = x_ref[...].astype(jnp.float32)
    sq = jnp.sum(xf * xf, axis=0, keepdims=True)              # (1, L)
    a = _lane_scale(sq, gamma_ref[...].astype(jnp.float32), fold, C)
    o_ref[...] = (xf * a + beta_ref[...].astype(jnp.float32)).astype(o_ref.dtype)


def _grn_reduce_kernel(x_ref, o_ref, *, tR, R, nS_inner, padded):
    # grid = (N, nSplit, nS_inner); x_ref: (tR, L); o_ref: (1, L) f32 partial
    # sum of squares, resident across the inner (reduction) axis.
    sp = pl.program_id(1)
    si = pl.program_id(2)
    tile = sp * nS_inner + si

    @pl.when(si == 0)
    def _init():
        o_ref[...] = jnp.zeros_like(o_ref)

    xf = x_ref[...].astype(jnp.float32)
    if padded:
        # Only boundary tiles pay for the iota/where mask.
        @pl.when((tile + 1) * tR > R)
        def _boundary():
            row = jax.lax.broadcasted_iota(jnp.int32, xf.shape, 0)
            keep = (tile * tR + row) < R
            o_ref[...] += jnp.sum(jnp.where(keep, xf * xf, 0.0),
                                  axis=0, keepdims=True)

        @pl.when((tile + 1) * tR <= R)
        def _interior():
            o_ref[...] += jnp.sum(xf * xf, axis=0, keepdims=True)
    else:
        o_ref[...] += jnp.sum(xf * xf, axis=0, keepdims=True)


def _grn_apply_kernel(x_ref, a_ref, beta_ref, o_ref):
    # x_ref/o_ref: (tR, L); a_ref: (1, L) f32 fused scale; beta_ref: (1, L).
    xf = x_ref[...].astype(jnp.float32)
    o_ref[...] = (xf * a_ref[...]
                  + beta_ref[...].astype(jnp.float32)).astype(o_ref.dtype)


# -------------------------------- wrapper -----------------------------------

def grn3d(x, gamma, beta, *, max_block_bytes=None):
    """GRN over spatial dims. x: (N, D, H, W, C); gamma/beta: (C,) or module-shaped."""
    N, D, H, W, C = x.shape
    S = D * H * W
    itemsize = jnp.dtype(x.dtype).itemsize
    vmem_cap = _vmem_capacity_bytes()

    default_blk = _default_block_bytes(itemsize, vmem_cap)
    if max_block_bytes is None:
        max_block_bytes = default_blk
    tile_budget = min(max_block_bytes, default_blk)

    fold = _choose_fold(S, C, itemsize, tile_budget)
    L = fold * C
    R = S // fold

    gamma = jnp.asarray(gamma).reshape(-1)
    beta = jnp.asarray(beta).reshape(-1)
    gamma_l = jnp.tile(gamma.reshape(1, C), (1, fold))
    beta_l = jnp.tile(beta.reshape(1, C), (1, fold))

    x2 = x.reshape(N, R, L)
    sample_bytes = R * L * itemsize
    vmem_hw_cap = (vmem_cap * 7) // 8

    use_fast = (sample_bytes <= max_block_bytes
                and _vmem_need(sample_bytes, itemsize) <= vmem_hw_cap)

    if use_fast:
        # -------- fast path: whole sample per grid step, single pass --------
        # TODO(synk): pipeline_mode=pl.Buffered(1) on the N==1 fast path would
        # halve in/out buffering (~2x larger single-pass samples on v7x).
        kernel = functools.partial(_grn_fast_kernel, fold=fold, C=C)
        out = pl.pallas_call(
            kernel,
            out_shape=jax.ShapeDtypeStruct((N, R, L), x.dtype),
            grid_spec=pltpu.PrefetchScalarGridSpec(
                num_scalar_prefetch=0,
                grid=(N,),
                in_specs=[
                    pl.BlockSpec((pl.Squeezed(), R, L), lambda n: (n, 0, 0)),
                    pl.BlockSpec((1, L), lambda n: (0, 0)),
                    pl.BlockSpec((1, L), lambda n: (0, 0)),
                ],
                out_specs=pl.BlockSpec((pl.Squeezed(), R, L),
                                       lambda n: (n, 0, 0)),
            ),
            compiler_params=pltpu.CompilerParams(
                dimension_semantics=("parallel",),
                vmem_limit_bytes=_vmem_limit(sample_bytes, itemsize, vmem_cap),
            ),
            cost_estimate=pl.CostEstimate(
                flops=4 * N * S * C,
                transcendentals=2 * N * C,
                bytes_accessed=2 * N * S * C * itemsize,
            ),
        )(x2, gamma_l, beta_l)
        return out.reshape(N, D, H, W, C)

    # -------------------- tiled path: reduce -> combine -> apply --------------------
    tR = _choose_row_tile(R, L, itemsize, tile_budget)
    nS = -(-R // tR)
    n_split = 2 if (N == 1 and nS % 2 == 0) else 1   # spatial split for v7x 2 TCs
    nS_inner = nS // n_split
    padded = (n_split * nS_inner * tR) != R
    block_bytes = tR * L * itemsize
    vlim = _vmem_limit(block_bytes, itemsize, vmem_cap)

    # Pass 1: per-(sample, split) per-lane sum of squares (read x once).
    reduce_kernel = functools.partial(
        _grn_reduce_kernel, tR=tR, R=R, nS_inner=nS_inner, padded=padded)
    sq_part = pl.pallas_call(
        reduce_kernel,
        out_shape=jax.ShapeDtypeStruct((N, n_split, 1, L), jnp.float32),
        grid_spec=pltpu.PrefetchScalarGridSpec(
            num_scalar_prefetch=0,
            grid=(N, n_split, nS_inner),
            in_specs=[
                pl.BlockSpec((pl.Squeezed(), tR, L),
                             lambda n, sp, si: (n, sp * nS_inner + si, 0)),
            ],
            out_specs=pl.BlockSpec((pl.Squeezed(), pl.Squeezed(), 1, L),
                                   lambda n, sp, si: (n, sp, 0, 0)),
        ),
        compiler_params=pltpu.CompilerParams(
            dimension_semantics=("parallel", "parallel", "arbitrary"),
            vmem_limit_bytes=vlim,
        ),
        cost_estimate=pl.CostEstimate(
            flops=2 * N * S * C,
            transcendentals=0,
            bytes_accessed=N * S * C * itemsize,
        ),
    )(x2)

    # Tiny per-sample combine (only N x C elements) at the JAX level.
    sq = jnp.sum(sq_part, axis=1).reshape(N, L)              # (N, L)
    if fold > 1:
        sq = sq.reshape(N, fold, C).sum(axis=1)              # (N, C)
    gx = jnp.sqrt(sq)
    nx = gx / (jnp.mean(gx, axis=-1, keepdims=True) + _EPS)
    a = gamma.astype(jnp.float32).reshape(1, C) * nx + 1.0   # (N, C)
    if fold > 1:
        a = jnp.tile(a, (1, fold))
    a = a.reshape(N, 1, L)

    # Pass 2: out = x * a + beta (read x once, write once); fully parallel so
    # megacore shards the spatial axis even for N == 1.
    out = pl.pallas_call(
        _grn_apply_kernel,
        out_shape=jax.ShapeDtypeStruct((N, R, L), x.dtype),
        grid_spec=pltpu.PrefetchScalarGridSpec(
            num_scalar_prefetch=0,
            grid=(N, nS),
            in_specs=[
                pl.BlockSpec((pl.Squeezed(), tR, L), lambda n, s: (n, s, 0)),
                pl.BlockSpec((pl.Squeezed(), 1, L), lambda n, s: (n, 0, 0)),
                pl.BlockSpec((1, L), lambda n, s: (0, 0)),
            ],
            out_specs=pl.BlockSpec((pl.Squeezed(), tR, L),
                                   lambda n, s: (n, s, 0)),
        ),
        compiler_params=pltpu.CompilerParams(
            dimension_semantics=("parallel", "parallel"),
            vmem_limit_bytes=vlim,
        ),
        cost_estimate=pl.CostEstimate(
            flops=2 * N * S * C,
            transcendentals=0,
            bytes_accessed=2 * N * S * C * itemsize,
        ),
    )(x2, a, beta_l)
    return out.reshape(N, D, H, W, C)


def grn3d_reference(x, gamma, beta):
    # Pure-JAX reference mirroring the PyTorch forward exactly.
    xf = x.astype(jnp.float32)
    gx = jnp.sqrt(jnp.sum(xf * xf, axis=(1, 2, 3), keepdims=True))   # (N,1,1,1,C)
    nx = gx / (jnp.mean(gx, axis=-1, keepdims=True) + 1e-6)
    g = jnp.asarray(gamma).reshape(1, 1, 1, 1, -1).astype(jnp.float32)
    b = jnp.asarray(beta).reshape(1, 1, 1, 1, -1).astype(jnp.float32)
    return (g * (xf * nx) + b + xf).astype(x.dtype)


if __name__ == "__main__":
    key = jax.random.PRNGKey(0)
    k_x, k_g, k_b, k_x2 = jax.random.split(key, 4)

    # Small shapes consistent with the module: (N, D, H, W, C)
    N, D, H, W, C = 2, 4, 4, 4, 32
    x = jax.random.normal(k_x, (N, D, H, W, C), dtype=jnp.float32)
    gamma = 0.1 * jax.random.normal(k_g, (C,), dtype=jnp.float32)
    beta = 0.1 * jax.random.normal(k_b, (C,), dtype=jnp.float32)
    ref = grn3d_reference(x, gamma, beta)

    # Case 1: fast single-pass path (generation-aware default block budget).
    out = jax.block_until_ready(grn3d(x, gamma, beta))
    assert out.shape == ref.shape
    assert jnp.allclose(out, ref, atol=1e-5, rtol=1e-5), (
        float(jnp.max(jnp.abs(out - ref))))

    # Case 2: force the tiled two-pass path (evenly divisible row tiles, N>1).
    out_t = jax.block_until_ready(grn3d(x, gamma, beta, max_block_bytes=4096))
    assert jnp.allclose(out_t, ref, atol=1e-5, rtol=1e-5), (
        float(jnp.max(jnp.abs(out_t - ref))))

    # Case 3: tiled path with N==1 (exercises the 2-way spatial split for
    # v7x megacore) and a ragged (masked) last row tile.
    x2 = jax.random.normal(k_x2, (1, 3, 4, 4, C), dtype=jnp.float32)
    ref2 = grn3d_reference(x2, gamma, beta)
    out2 = jax.block_until_ready(grn3d(x2, gamma, beta, max_block_bytes=4096))
    assert jnp.allclose(out2, ref2, atol=1e-5, rtol=1e-5), (
        float(jnp.max(jnp.abs(out2 - ref2))))

    print("KERNEL_OK")
</pallas_src>

<mosaic_0001>
module attributes {stable_mosaic.version = 11 : i64} {
  func.func @_grn_fast_kernel(%arg0: i32, %arg1: memref<1x16x128xf32, #tpu.memory_space<vmem>>, %arg2: memref<1x128xf32, #tpu.memory_space<vmem>>, %arg3: memref<1x128xf32, #tpu.memory_space<vmem>>, %arg4: memref<1x16x128xf32, #tpu.memory_space<vmem>>) attributes {dimension_semantics = [#tpu.dimension_semantics<parallel>], iteration_bounds = array<i64: 2>, scalar_prefetch = 0 : i64, scratch_operands = 0 : i64, tpu.core_type = #tpu.core_type<tc>, window_params = [{transform_indices = @transform_0, window_bounds = array<i64: 1, 16, 128>}, {pipeline_mode = #tpu.pipeline_mode<synchronous>, transform_indices = @transform_1, window_bounds = array<i64: 1, 128>}, {pipeline_mode = #tpu.pipeline_mode<synchronous>, transform_indices = @transform_2, window_bounds = array<i64: 1, 128>}, {transform_indices = @transform_3, window_bounds = array<i64: 1, 16, 128>}]} {
    %c0 = arith.constant 0 : index
    %c0_0 = arith.constant 0 : index
    %c0_1 = arith.constant 0 : index
    %0 = vector.load %arg1[%c0, %c0_0, %c0_1] : memref<1x16x128xf32, #tpu.memory_space<vmem>>, vector<1x16x128xf32>
    %1 = vector.shape_cast %0 : vector<1x16x128xf32> to vector<16x128xf32>
    %2 = arith.mulf %1, %1 : vector<16x128xf32>
    %cst = arith.constant dense<0.000000e+00> : vector<128xf32>
    %3 = vector.multi_reduction <add>, %2, %cst [0] : vector<16x128xf32> to vector<128xf32>
    %4 = vector.shape_cast %3 : vector<128xf32> to vector<1x128xf32>
    %c0_2 = arith.constant 0 : index
    %c0_3 = arith.constant 0 : index
    %5 = vector.load %arg2[%c0_2, %c0_3] : memref<1x128xf32, #tpu.memory_space<vmem>>, vector<1x128xf32>
    %6 = vector.extract_strided_slice %4 {offsets = [0, 0], sizes = [1, 32], strides = [1, 1]} : vector<1x128xf32> to vector<1x32xf32>
    %7 = vector.extract_strided_slice %4 {offsets = [0, 32], sizes = [1, 32], strides = [1, 1]} : vector<1x128xf32> to vector<1x32xf32>
    %8 = arith.addf %6, %7 : vector<1x32xf32>
    %9 = vector.extract_strided_slice %4 {offsets = [0, 64], sizes = [1, 32], strides = [1, 1]} : vector<1x128xf32> to vector<1x32xf32>
    %10 = arith.addf %8, %9 : vector<1x32xf32>
    %11 = vector.extract_strided_slice %4 {offsets = [0, 96], sizes = [1, 32], strides = [1, 1]} : vector<1x128xf32> to vector<1x32xf32>
    %12 = arith.addf %10, %11 : vector<1x32xf32>
    %13 = math.sqrt %12 : vector<1x32xf32>
    %cst_4 = arith.constant dense<0.000000e+00> : vector<1xf32>
    %14 = vector.multi_reduction <add>, %13, %cst_4 [1] : vector<1x32xf32> to vector<1xf32>
    %15 = vector.shape_cast %14 : vector<1xf32> to vector<1x1xf32>
    %cst_5 = arith.constant 3.200000e+01 : f32
    %16 = vector.broadcast %cst_5 : f32 to vector<1x1xf32>
    %17 = arith.divf %15, %16 : vector<1x1xf32>
    %cst_6 = arith.constant 9.99999997E-7 : f32
    %18 = vector.broadcast %cst_6 : f32 to vector<1x1xf32>
    %19 = arith.addf %17, %18 : vector<1x1xf32>
    %20 = vector.broadcast %19 : vector<1x1xf32> to vector<1x32xf32>
    %21 = arith.divf %13, %20 : vector<1x32xf32>
    %22 = tpu.concatenate %21, %21, %21, %21 in 1 : vector<1x32xf32>, vector<1x32xf32>, vector<1x32xf32>, vector<1x32xf32> -> vector<1x128xf32>
    %23 = arith.mulf %5, %22 : vector<1x128xf32>
    %cst_7 = arith.constant 1.000000e+00 : f32
    %24 = vector.broadcast %cst_7 : f32 to vector<1x128xf32>
    %25 = arith.addf %23, %24 : vector<1x128xf32>
    %26 = vector.broadcast %25 : vector<1x128xf32> to vector<16x128xf32>
    %27 = arith.mulf %1, %26 : vector<16x128xf32>
    %c0_8 = arith.constant 0 : index
    %c0_9 = arith.constant 0 : index
    %28 = vector.load %arg3[%c0_8, %c0_9] : memref<1x128xf32, #tpu.memory_space<vmem>>, vector<1x128xf32>
    %29 = vector.broadcast %28 : vector<1x128xf32> to vector<16x128xf32>
    %30 = arith.addf %27, %29 : vector<16x128xf32>
    %c0_10 = arith.constant 0 : index
    %c0_11 = arith.constant 0 : index
    %c0_12 = arith.constant 0 : index
    %31 = vector.load %arg4[%c0_10, %c0_11, %c0_12] : memref<1x16x128xf32, #tpu.memory_space<vmem>>, vector<1x16x128xf32>
    %32 = vector.shape_cast %31 : vector<1x16x128xf32> to vector<16x128xf32>
    %33 = vector.shape_cast %30 : vector<16x128xf32> to vector<1x16x128xf32>
    tpu.vector_store %arg4[%c0_10, %c0_11, %c0_12], %33 {strides = array<i32>} : memref<1x16x128xf32, #tpu.memory_space<vmem>>, vector<1x16x128xf32>,
    return
  }
  func.func @transform_0(%arg0: i32) -> (i32, i32, i32) {
    %c0_i32 = arith.constant 0 : i32
    %c0_i32_0 = arith.constant 0 : i32
    %c0_i32_1 = arith.constant 0 : i32
    return %arg0, %c0_i32, %c0_i32_0 : i32, i32, i32
  }
  func.func @transform_1(%arg0: i32) -> (i32, i32) {
    %c0_i32 = arith.constant 0 : i32
    %c0_i32_0 = arith.constant 0 : i32
    %c0_i32_1 = arith.constant 0 : i32
    return %c0_i32, %c0_i32_0 : i32, i32
  }
  func.func @transform_2(%arg0: i32) -> (i32, i32) {
    %c0_i32 = arith.constant 0 : i32
    %c0_i32_0 = arith.constant 0 : i32
    %c0_i32_1 = arith.constant 0 : i32
    return %c0_i32, %c0_i32_0 : i32, i32
  }
  func.func @transform_3(%arg0: i32) -> (i32, i32, i32) {
    %c0_i32 = arith.constant 0 : i32
    %c0_i32_0 = arith.constant 0 : i32
    %c0_i32_1 = arith.constant 0 : i32
    return %arg0, %c0_i32, %c0_i32_0 : i32, i32, i32
  }
}

</mosaic_0001>

<llo_original>
// kernel: tpu_custom_call.1
$region0: #{tpu_custom_call.1}
  #allocation0 [shape = 'u32[]', space=smem, size = 0x4, offset = 0x4, fixed_abs, tag = 'smem constant byte address 0x4 - core index']
  #allocation1 [shape = 'u32[144,128]{1,0:T(1,128)}', space=vmem, size = 0x12000, scoped, tag = 'internal scratch']
  %s0 = inlined_call_operand.hbm [shape: f32[2,16,128], index: 0, kind: input, shape index: {}]
  %s1 = inlined_call_operand.vmem [shape: f32[1,128], index: 1, kind: input, shape index: {}]
  %s2 = inlined_call_operand.vmem [shape: f32[1,128], index: 2, kind: input, shape index: {}]
  %s3 = inlined_call_operand.hbm [shape: f32[2,16,128], index: 3, kind: output, shape index: {}]
  %s4 = sld [smem:[#allocation0]]
  $region49: #{tpu_custom_call.1} parent=0
    _
  %s6 = ssub.s32 1, %s4
  %s7 = scalar_select 0, %s6, %s4
  $region1: #{tpu_custom_call.1} parent=0
    #allocation2 [shape = 'u8[16384]{0}', space=vmem, size = 0x4000, scoped, tag = 'input window, operand 0']
    #allocation3 [shape = 's32[2]{0}', space=sflag, size = 0x8, scoped, tag = 'scoped memory for tpu_custom_call.1']
    #allocation4 [shape = 's32[2]{0}', space=sflag, size = 0x8, scoped, tag = 'scoped memory for tpu_custom_call.1']
    #allocation5 [shape = 'u8[16384]{0}', space=vmem, size = 0x4000, scoped, tag = 'output window, operand 0']
    %8 = vsyncpa [#allocation3], 0
    %s9 = scalar_lea.sflag [#allocation3], 1
    %10 = vsyncpa %s9, 0
    %11 = vsyncpa [#allocation4], 0
    %s12 = scalar_lea.sflag [#allocation4], 1
    %13 = vsyncpa %s12, 0
    loop: start=0, step=1, limit=4
    $region2: #{tpu_custom_call.1} parent=1 // loop_pre_header
      _
    $region3: #{tpu_custom_call.1} parent=1 // loop_header
      %s15 = sphi 0, %s19
      %p16 = scmp.ge.s32.totalorder %s15, 4
      %s25 = sphi 0, %s27
      %s28 = sphi 0, %s25
      %s29 = sphi 0, %s28
      %s45 = sphi 0, %s29
      %s49 = sphi 0, %s49
      %s51 = sphi 0, %s49
      %s52 = sphi 0, %s51
      %s66 = sphi 0, %s52
      %s70 = sphi 0, %s70
      %s72 = sphi 0, %s70
      %s73 = sphi 0, %s72
      %s87 = sphi 0, %s73
      %s93 = sphi 0, %s95
      %s96 = sphi 0, %s93
      %s97 = sphi 0, %s96
      %s113 = sphi 0, %s97
    $region4: #{tpu_custom_call.1} parent=1 // loop_header_branch
      %18 = sbr.rel (%p16) target = $region8
    $region5: #{tpu_custom_call.1} parent=1 // loop_body
      %s20 = ssub.s32 %s15, 1
      %s21 = ssub.s32 %s15, 2
      %s22 = sadd.s32 %s15, 1
      %s23 = ssub.s32 %s15, %s22
      %p24 = scmp.eq.s32.totalorder %s23, 0
      %s26 = sadd.s32 %s25, 1
      %s27 = scalar_select %p24, %s25, %s26
      %p30 = pneg %p24
      %p31 = scmp.eq.s32.totalorder %s15, 1
      %p32 = por %p30, %p31
      %p33 = scmp.ne.s32.totalorder %s25, %s28
      %p34 = scmp.eq.s32.totalorder %s15, 0
      %p35 = por %p33, %p34
      %p36 = scmp.ne.s32.totalorder %s25, %s28
      %p37 = scmp.eq.s32.totalorder %s20, 1
      %p38 = por %p36, %p37
      %p39 = scmp.ne.s32.totalorder %s28, %s29
      %p40 = scmp.eq.s32.totalorder %s20, 0
      %p41 = por %p39, %p40
      %p42 = scmp.ne.s32.totalorder %s28, %s29
      %p43 = scmp.eq.s32.totalorder %s21, 1
      %p44 = por %p42, %p43
      %p46 = scmp.ne.s32.totalorder %s29, %s45
      %p47 = scmp.eq.s32.totalorder %s21, 0
      %p48 = por %p46, %p47
      %s50 = sadd.s32 %s49, 1
      %p53 = scmp.eq.s32.totalorder %s15, 1
      %p54 = scmp.ne.s32.totalorder %s49, %s51
      %p55 = scmp.eq.s32.totalorder %s15, 0
      %p56 = por %p54, %p55
      %p57 = scmp.ne.s32.totalorder %s49, %s51
      %p58 = scmp.eq.s32.totalorder %s20, 1
      %p59 = por %p57, %p58
      %p60 = scmp.ne.s32.totalorder %s51, %s52
      %p61 = scmp.eq.s32.totalorder %s20, 0
      %p62 = por %p60, %p61
      %p63 = scmp.ne.s32.totalorder %s51, %s52
      %p64 = scmp.eq.s32.totalorder %s21, 1
      %p65 = por %p63, %p64
      %p67 = scmp.ne.s32.totalorder %s52, %s66
      %p68 = scmp.eq.s32.totalorder %s21, 0
      %p69 = por %p67, %p68
      %s71 = sadd.s32 %s70, 1
      %p74 = scmp.eq.s32.totalorder %s15, 1
      %p75 = scmp.ne.s32.totalorder %s70, %s72
      %p76 = scmp.eq.s32.totalorder %s15, 0
      %p77 = por %p75, %p76
      %p78 = scmp.ne.s32.totalorder %s70, %s72
      %p79 = scmp.eq.s32.totalorder %s20, 1
      %p80 = por %p78, %p79
      %p81 = scmp.ne.s32.totalorder %s72, %s73
      %p82 = scmp.eq.s32.totalorder %s20, 0
      %p83 = por %p81, %p82
      %p84 = scmp.ne.s32.totalorder %s72, %s73
      %p85 = scmp.eq.s32.totalorder %s21, 1
      %p86 = por %p84, %p85
      %p88 = scmp.ne.s32.totalorder %s73, %s87
      %p89 = scmp.eq.s32.totalorder %s21, 0
      %p90 = por %p88, %p89
      %s91 = ssub.s32 %s15, %s22
      %p92 = scmp.eq.s32.totalorder %s91, 0
      %s94 = sadd.s32 %s93, 1
      %s95 = scalar_select %p92, %s93, %s94
      %p98 = pneg %p92
      %p99 = scmp.eq.s32.totalorder %s15, 1
      %p100 = por %p98, %p99
      %p101 = scmp.ne.s32.totalorder %s93, %s96
      %p102 = scmp.eq.s32.totalorder %s15, 0
      %p103 = por %p101, %p102
      %p104 = scmp.ne.s32.totalorder %s93, %s96
      %p105 = scmp.eq.s32.totalorder %s20, 1
      %p106 = por %p104, %p105
      %p107 = scmp.ne.s32.totalorder %s96, %s97
      %p108 = scmp.eq.s32.totalorder %s20, 0
      %p109 = por %p107, %p108
      %p110 = scmp.ne.s32.totalorder %s96, %s97
      %p111 = scmp.eq.s32.totalorder %s21, 1
      %p112 = por %p110, %p111
      %p114 = scmp.ne.s32.totalorder %s97, %s113
      %p115 = scmp.eq.s32.totalorder %s21, 0
      %p116 = por %p114, %p115
      %p117 = scmp.le.s32.totalorder 1, %s15
      %p118 = scmp.lt.s32.totalorder %s15, 3
      %p119 = pnand %p117, %p118
      %p120 = pneg %p119
      // Predicated region
      $region9: #{tpu_custom_call.1} parent=5 // pred_check
        _
      $region10: #{tpu_custom_call.1} parent=5 // pred_check_branch
        %122 = sbr.rel (%p119) target = $region12
      $region11: #{tpu_custom_call.1} parent=5 // pred_region
        %s123 = ssub.s32 %s15, 1
        // Predicated region
        $region13: #{tpu_custom_call.1} parent=11 // pred_check
          %p124 = pneg %p62
        $region14: #{tpu_custom_call.1} parent=11 // pred_check_branch
          %126 = sbr.rel (%p124) target = $region16
        $region15: #{tpu_custom_call.1} parent=11 // pred_region
          _
        $region16: #{tpu_custom_call.1} parent=11 // pred_fallthru
          _
        // Predicated region
        $region17: #{tpu_custom_call.1} parent=11 // pred_check
          %p127 = pneg %p83
        $region18: #{tpu_custom_call.1} parent=11 // pred_check_branch
          %129 = sbr.rel (%p127) target = $region20
        $region19: #{tpu_custom_call.1} parent=11 // pred_region
          _
        $region20: #{tpu_custom_call.1} parent=11 // pred_fallthru
          _
      $region12: #{tpu_custom_call.1} parent=5 // pred_fallthru
        _
      %p130 = scmp.lt.s32.totalorder %s15, 2
      // Predicated region
      $region21: #{tpu_custom_call.1} parent=5 // pred_check
        %p131 = pneg %p130
      $region22: #{tpu_custom_call.1} parent=5 // pred_check_branch
        %133 = sbr.rel (%p131) target = $region24
      $region23: #{tpu_custom_call.1} parent=5 // pred_region
        // Predicated region
        $region25: #{tpu_custom_call.1} parent=23 // pred_check
          %p134 = pneg %p35
        $region26: #{tpu_custom_call.1} parent=23 // pred_check_branch
          %136 = sbr.rel (%p134) target = $region28
        $region27: #{tpu_custom_call.1} parent=23 // pred_region
          %s137 = sand.u32 %s25, 1
          %s138 = scalar_lea.sflag [#allocation3], %s137
          %s139 = sand.u32 %s25, 1
          %s140 = smul.addr %s139, 16
          %s141 = scalar_lea.vmem [#allocation2], %s140
          %s143 = ssub.s32 256, 256
          %144 = vsyncadd %s138, %s143
          %s145 = smul.addr %s15, 2
          %s146 = smul.addr %s145, 128
          %s147 = scalar_lea.hbm %s0, %s146
          %s148 = sshll.u32 %s141, 4
          %s149 = int_to_ptr.vmem [resolvable:$true] %s148
          %154 = dma.hbm_to_vmem [thread:$0]  %s147, 256, %s149, %s138, 128, 128, 8
        $region28: #{tpu_custom_call.1} parent=23 // pred_fallthru
          _
      $region24: #{tpu_custom_call.1} parent=5 // pred_fallthru
        _
      %p155 = scmp.le.s32.totalorder 1, %s15
      %p156 = scmp.lt.s32.totalorder %s15, 3
      %p157 = pnand %p155, %p156
      %p158 = pneg %p157
      // Predicated region
      $region29: #{tpu_custom_call.1} parent=5 // pred_check
        _
      $region30: #{tpu_custom_call.1} parent=5 // pred_check_branch
        %160 = sbr.rel (%p157) target = $region32
      $region31: #{tpu_custom_call.1} parent=5 // pred_region
        %s161 = ssub.s32 %s15, 1
        %s162 = sand.u32 %s28, 1
        %s163 = scalar_lea.sflag [#allocation3], %s162
        %s164 = sand.u32 %s28, 1
        %s165 = smul.addr %s164, 16
        %s166 = scalar_lea.vmem [#allocation2], %s165
        // Predicated region
        $region33: #{tpu_custom_call.1} parent=31 // pred_check
          %p167 = pneg %p41
        $region34: #{tpu_custom_call.1} parent=31 // pred_check_branch
          %169 = sbr.rel (%p167) target = $region36
        $region35: #{tpu_custom_call.1} parent=31 // pred_region
          %170 = dma.done %s163, 256
        $region36: #{tpu_custom_call.1} parent=31 // pred_fallthru
          _
        %s171 = sand.u32 %s28, 1
        %s172 = scalar_lea.sflag [#allocation3], %s171
        %s173 = sand.u32 %s28, 1
        %s174 = smul.addr %s173, 16
        %s175 = scalar_lea.vmem [#allocation2], %s174
        %p176 = pneg %p41
        %p177 = pneg %p38
        %p178 = pneg %p62
        %p179 = pneg %p59
        %p180 = pneg %p83
        %p181 = pneg %p80
        %p182 = pneg %p109
        %p183 = pneg %p106
        %s184 = sand.u32 %s96, 1
        %s185 = scalar_lea.sflag [#allocation4], %s184
        %s186 = sand.u32 %s96, 1
        %s187 = smul.addr %s186, 16
        %s188 = scalar_lea.vmem [#allocation5], %s187
        %v189 = vld [vmem:[%s166] sm:$0xff]
        %v190 = vld [vmem:[%s166 + $0x8] sm:$0xff]
        %v191 = vmul.f32 %v189, %v189
        %v192 = vmul.f32 %v190, %v190
        %v193 = vadd.f32 %v191, %v192
        %v194 = vrot.slane %v193, 4
        %v195 = vadd.f32 %v193, %v194
        %v196 = vrot.slane %v195, 2
        %v197 = vadd.f32 %v195, %v196
        %v198 = vrot.slane %v197, 1
        %v199 = vadd.f32 %v197, %v198
        %v200 = vld [vmem:[%s1] sm:$0x1]
        %202 = vrot.lane.b32.xlu0 %v199, 96
        %v203 = vpop.permute.xlu0 %202
        %v205 = vadd.f32 %v199, %v203
        %206 = vrot.lane.b32.xlu0 %v199, 64
        %v207 = vpop.permute.xlu0 %206
        %v209 = vadd.f32 %v205, %v207
        %210 = vrot.lane.b32.xlu0 %v199, 32
        %v211 = vpop.permute.xlu0 %210
        %v213 = vadd.f32 %v209, %v211
        %v214 = vrsqrt.pop %v213
        %v215 = vmul.f32 %v213, %v214
        %vm216 = vcmp.eq.f32.partialorder %v213, inf
        %v217 = vsel %vm216, %v213, %v215
        %vm218 = vcmp.eq.f32.partialorder %v213, 0.0
        %v219 = vand.u32 %v213, 2147483648
        %v220 = vsel %vm218, %v219, %v217
        %vm221 = vcmask 253952
        %v222 = vsel %vm221, %v220, 0.0
        %223 = vadd.xlane.f32.xlu0 %v222
        %v224 = vpop.xlane.xlu0 %223
        %v225 = vrcp.pop 32.0
        %v226 = vmul.f32 %v224, %v225
        %v227 = vadd.f32 %v226, 1e-06
        %v228 = vrcp.pop %v227
        %v229 = vmul.f32 %v220, %v228
        %231 = vrot.lane.b32.xlu0 %v229, 32
        %v232 = vpop.permute.xlu0 %231
        %234 = vrot.lane.b32.xlu0 %v229, 64
        %v235 = vpop.permute.xlu0 %234
        %237 = vrot.lane.b32.xlu0 %v229, 96
        %v238 = vpop.permute.xlu0 %237
        %vm240 = vcmask 261120
        %v241 = vsel %vm240, %v229, %v232
        %vm242 = vcmask 523264
        %v243 = vsel %vm242, %v241, %v235
        %vm244 = vcmask 785408
        %v245 = vsel %vm244, %v243, %v238
        %v246 = vmul.f32 %v200, %v245
        %v247 = vadd.f32 %v246, 1.0
        %v249 = vlaneseq
        %v250 = vshrl.u32 %v249, 7
        %v251 = vsub.s32 0, %v250
        %v252 = vrot.slane %v247, %v251
        %v254 = vmul.f32 %v189, %v252
        %v255 = vmul.f32 %v190, %v252
        %v256 = vld [vmem:[%s2] sm:$0x1]
        %v258 = vlaneseq
        %v259 = vshrl.u32 %v258, 7
        %v260 = vsub.s32 0, %v259
        %v261 = vrot.slane %v256, %v260
        %v263 = vadd.f32 %v254, %v261
        %v264 = vadd.f32 %v255, %v261
        %265 = vst [vmem:[%s188] sm:$0xff] %v263
        %266 = vst [vmem:[%s188 + $0x8] sm:$0xff] %v264
        %s267 = sand.u32 %s96, 1
        %s268 = scalar_lea.sflag [#allocation4], %s267
        %s269 = sand.u32 %s96, 1
        %s270 = smul.addr %s269, 16
        %s271 = scalar_lea.vmem [#allocation5], %s270
        // Predicated region
        $region37: #{tpu_custom_call.1} parent=31 // pred_check
          %p272 = pneg %p106
        $region38: #{tpu_custom_call.1} parent=31 // pred_check_branch
          %274 = sbr.rel (%p272) target = $region40
        $region39: #{tpu_custom_call.1} parent=31 // pred_region
          %s276 = ssub.s32 256, 256
          %277 = vsyncadd %s268, %s276
          %s278 = smul.addr %s20, 2
          %s279 = smul.addr %s278, 128
          %s280 = scalar_lea.hbm %s3, %s279
          %s281 = sshll.u32 %s271, 4
          %s282 = int_to_ptr.vmem [resolvable:$true] %s281
          %287 = dma.vmem_to_hbm [thread:$0]  %s282, 256, %s280, %s268, 128, 128, 8
        $region40: #{tpu_custom_call.1} parent=31 // pred_fallthru
          _
      $region32: #{tpu_custom_call.1} parent=5 // pred_fallthru
        _
      %p288 = scmp.le.s32.totalorder 2, %s15
      // Predicated region
      $region41: #{tpu_custom_call.1} parent=5 // pred_check
        %p289 = pneg %p288
      $region42: #{tpu_custom_call.1} parent=5 // pred_check_branch
        %291 = sbr.rel (%p289) target = $region44
      $region43: #{tpu_custom_call.1} parent=5 // pred_region
        %s292 = ssub.s32 %s15, 2
        // Predicated region
        $region45: #{tpu_custom_call.1} parent=43 // pred_check
          %p293 = pneg %p112
        $region46: #{tpu_custom_call.1} parent=43 // pred_check_branch
          %295 = sbr.rel (%p293) target = $region48
        $region47: #{tpu_custom_call.1} parent=43 // pred_region
          %s296 = sand.u32 %s97, 1
          %s297 = scalar_lea.sflag [#allocation4], %s296
          %s298 = sand.u32 %s97, 1
          %s299 = smul.addr %s298, 16
          %s300 = scalar_lea.vmem [#allocation5], %s299
          %301 = dma.done %s297, 256
        $region48: #{tpu_custom_call.1} parent=43 // pred_fallthru
          _
      $region44: #{tpu_custom_call.1} parent=5 // pred_fallthru
        _
    $region6: #{tpu_custom_call.1} parent=1 // loop_footer
      %s19 = sadd.s32 1, %s15
    $region7: #{tpu_custom_call.1} parent=1 // loop_footer_branch
      %14 = sbr.rel target = $region3
    $region8: #{tpu_custom_call.1} parent=1 // loop_exit
      _
    %302 = vsyncpa [#allocation3], 1
    %s303 = scalar_lea.sflag [#allocation3], 1
    %304 = vsyncpa %s303, 1
    %305 = vsyncpa [#allocation4], 1
    %s306 = scalar_lea.sflag [#allocation4], 1
    %307 = vsyncpa %s306, 1

</llo_original>
